<compile_context>
chip_gen: v7x
topology: tpu7x:2x2x1
jax: 0.10.0
libtpu: 0.0.40
codegen_flags: <defaults>
</compile_context>

<pallas_src>
import math

import jax
import jax.numpy as jnp
from jax.experimental import pallas as pl
from jax.experimental.pallas import tpu as pltpu

LOG_2PI = math.log(2.0 * math.pi)


def _make_sumsq_kernel(tr, lanes, rows_chunk, n_red, n_rows, needs_mask):
    """Kernel: accumulate a lane-dense (8, lanes) partial sum of z**2 per
    parallel chunk, chunking the (tr, lanes) tile in rows_chunk-row pieces."""
    n_chunks = tr // rows_chunk

    def kernel(z_ref, out_ref):
        i = pl.program_id(0)          # parallel axis (per-TensorCore chunk)
        j = pl.program_id(1)          # reduction axis (innermost)

        @pl.when(j == 0)
        def _():
            out_ref[...] = jnp.zeros_like(out_ref)

        if needs_mask:
            bi = i * n_red + j                    # unclamped logical block id
            valid_rows = n_rows - bi * tr         # <= 0 for redundant clamped block

        def accumulate_chunk(r0):
            # Upcast only this chunk: bounds f32 temporaries to a few vregs.
            zc = z_ref[pl.ds(r0, rows_chunk), :].astype(jnp.float32)
            if needs_mask:
                rows = r0 + jax.lax.broadcasted_iota(
                    jnp.int32, (rows_chunk, lanes), 0)
                zc = jnp.where(rows < valid_rows, zc, 0.0)
            zz = zc * zc
            # Fold groups of 8 rows (whole sublane tiles) on top of each other:
            # layout-preserving reshape + whole-vreg VPU adds; stays lane-dense.
            out_ref[...] += jnp.sum(zz.reshape(rows_chunk // 8, 8, lanes), axis=0)

        if n_chunks == 1:
            accumulate_chunk(0)
        else:
            def body(c, carry):
                accumulate_chunk(pl.multiple_of(c * rows_chunk, rows_chunk))
                return carry
            jax.lax.fori_loop(0, n_chunks, body, 0, unroll=True)

    return kernel


def _chip_config():
    """(n_par_max, target_block_bytes, vmem_limit_bytes) per TPU generation."""
    kind = ""
    try:
        kind = jax.devices()[0].device_kind.lower()
    except Exception:
        pass
    if "v7" in kind or "7x" in kind:
        # 2 TensorCores/chip, fastest HBM: big tiles + 2-way parallel split.
        return 2, 8 * 1024 * 1024, 40 * 1024 * 1024
    if "v6" in kind:
        # Single TC; big tiles amortize the ~0.35us/step overhead.
        return 1, 8 * 1024 * 1024, 40 * 1024 * 1024
    # v5e / unknown: conservative (16 MiB default scoped VMEM, single TC).
    return 1, 2 * 1024 * 1024, None


def nll_loss(z, sldj, k=256, *, target_block_bytes=None, n_par_max=None):
    """Pallas NLLLoss.  z: (B, ...) float array (fed in its native dtype);
    sldj: (B,).  Returns a float32 scalar identical to the PyTorch module."""
    B = z.shape[0]
    D = 1
    for s in z.shape[1:]:
        D *= int(s)
    N = B * D

    cfg_npar, cfg_block, vmem_limit = _chip_config()
    if n_par_max is None:
        n_par_max = cfg_npar
    if target_block_bytes is None:
        target_block_bytes = cfg_block

    z_flat = z.reshape(-1)                      # native dtype; kernel upcasts in VMEM
    itemsize = jnp.dtype(z_flat.dtype).itemsize

    # ---- lane width: 128-multiple divisor of N => reshape is free (no pad) ---
    if N % 512 == 0:
        lanes = 512
    elif N % 256 == 0:
        lanes = 256
    elif N % 128 == 0:
        lanes = 128
    else:
        # TODO(synk): degenerate N (not a multiple of 128) takes a small pad copy.
        lanes = 128
        z_flat = jnp.pad(z_flat, (0, (-N) % lanes))   # zeros: exact for sum(z^2)

    n_rows = z_flat.size // lanes
    z2d = z_flat.reshape(n_rows, lanes)

    if n_rows < 8:                               # tiny input: pad rows to one sublane tile
        z2d = jnp.pad(z2d, ((0, 8 - n_rows), (0, 0)))   # tiny, zeros are exact
        n_rows = 8

    # ---- row-tile size: multiple of the in-kernel chunk, ~target bytes ------
    ROWS_CHUNK = 256                             # f32 chunk temp <= 512 KiB
    tr = max(8, target_block_bytes // (lanes * itemsize))
    tr = min(tr, n_rows)
    tr = (tr // 8) * 8
    if tr >= ROWS_CHUNK:
        tr = (tr // ROWS_CHUNK) * ROWS_CHUNK
        rows_chunk = ROWS_CHUNK
    else:
        rows_chunk = tr

    n_blocks = pl.cdiv(n_rows, tr)
    n_par = max(1, min(n_par_max, n_blocks))     # 2 only on v7x (2 TCs)
    n_red = pl.cdiv(n_blocks, n_par)
    # Ragged last tile and/or redundant clamped tile -> mask rows in-kernel.
    needs_mask = (n_par * n_red * tr) != n_rows

    kernel = _make_sumsq_kernel(tr, lanes, rows_chunk, n_red, n_rows, needs_mask)

    def z_index_map(i, j):
        # Clamp so a redundant tile (odd n_blocks split across 2 cores on v7x)
        # re-reads the last valid block instead of going OOB; its contribution
        # is masked to zero inside the kernel.
        return (jnp.minimum(i * n_red + j, n_blocks - 1), 0)

    compiler_kwargs = dict(dimension_semantics=("parallel", "arbitrary"))
    if vmem_limit is not None:
        compiler_kwargs["vmem_limit_bytes"] = vmem_limit

    partials = pl.pallas_call(
        kernel,
        out_shape=jax.ShapeDtypeStruct((n_par * 8, lanes), jnp.float32),
        grid_spec=pltpu.PrefetchScalarGridSpec(
            num_scalar_prefetch=0,
            grid=(n_par, n_red),
            in_specs=[
                # Full-width (contiguous) lane-dense tiles.  If a profile shows
                # exposed DMA at steady state on v7x, the next knob is
                # pipeline_mode=pl.Buffered(3) on this BlockSpec.
                pl.BlockSpec((tr, lanes), z_index_map),
            ],
            out_specs=pl.BlockSpec((8, lanes), lambda i, j: (i, 0)),
        ),
        compiler_params=pltpu.CompilerParams(**compiler_kwargs),
    )(z2d)

    # ---- tiny scalar epilogue (O(B) + O(n_par*8*lanes) elements) ------------
    sumsq = jnp.sum(partials)
    const_per_row = (0.5 * LOG_2PI + math.log(float(k))) * float(D)
    prior_ll_sum = -0.5 * sumsq - const_per_row * float(B)
    ll_sum = prior_ll_sum + jnp.sum(sldj.astype(jnp.float32))
    return -(ll_sum / float(B))


def nll_loss_ref(z, sldj, k=256):
    B = z.shape[0]
    D = 1
    for s in z.shape[1:]:
        D *= int(s)
    zf = z.reshape(B, -1).astype(jnp.float32)
    prior_ll = -0.5 * (zf ** 2 + LOG_2PI)
    prior_ll = prior_ll.sum(-1) - math.log(float(k)) * D
    ll = prior_ll + sldj.astype(jnp.float32)
    return -ll.mean()


if __name__ == "__main__":
    key = jax.random.PRNGKey(0)
    kz, ks, kz2, ks2 = jax.random.split(key, 4)

    # Shapes implied by the module (RealNVP on images): NCHW, D = C*H*W = 1024.
    B, C, H, W = 2, 4, 16, 16
    z = jax.random.normal(kz, (B, C, H, W), dtype=jnp.float32)
    sldj = jax.random.normal(ks, (B,), dtype=jnp.float32)

    out = jax.block_until_ready(nll_loss(z, sldj, k=256))
    ref = nll_loss_ref(z, sldj, k=256)
    assert jnp.allclose(out, ref, rtol=1e-5, atol=1e-5), (out, ref)

    # Ragged row-tile path (n_rows not a multiple of the tile) — exercises the
    # in-kernel iota mask that replaced the jnp.pad copy.
    B2, C2, H2, W2 = 5, 8, 16, 16
    z2 = jax.random.normal(kz2, (B2, C2, H2, W2), dtype=jnp.float32)
    sldj2 = jax.random.normal(ks2, (B2,), dtype=jnp.float32)
    out2 = jax.block_until_ready(nll_loss(z2, sldj2, k=256))
    ref2 = nll_loss_ref(z2, sldj2, k=256)
    assert jnp.allclose(out2, ref2, rtol=1e-5, atol=1e-5), (out2, ref2)

    # Native bf16 path (halves HBM traffic; kernel upcasts per-chunk in VMEM).
    z_bf16 = z2.astype(jnp.bfloat16)
    out_bf = jax.block_until_ready(nll_loss(z_bf16, sldj2, k=256))
    ref_bf = nll_loss_ref(z_bf16.astype(jnp.float32), sldj2, k=256)
    assert jnp.allclose(out_bf, ref_bf, rtol=1e-4, atol=1e-4), (out_bf, ref_bf)

    print("KERNEL_OK")
</pallas_src>

<mosaic_0001>
module attributes {stable_mosaic.version = 11 : i64} {
  func.func @kernel(%arg0: i32, %arg1: i32, %arg2: memref<8x512xf32, #tpu.memory_space<vmem>>, %arg3: memref<8x512xf32, #tpu.memory_space<vmem>>) attributes {dimension_semantics = [#tpu.dimension_semantics<parallel>, #tpu.dimension_semantics<arbitrary>], iteration_bounds = array<i64: 1, 1>, scalar_prefetch = 0 : i64, scratch_operands = 0 : i64, tpu.core_type = #tpu.core_type<tc>, window_params = [{transform_indices = @transform_0, window_bounds = array<i64: 8, 512>}, {transform_indices = @transform_1, window_bounds = array<i64: 8, 512>}]} {
    %c0_i32 = arith.constant 0 : i32
    %0 = arith.cmpi eq, %arg1, %c0_i32 : i32
    %1 = arith.extui %0 : i1 to i32
    %c0_i32_0 = arith.constant 0 : i32
    %2 = arith.cmpi ne, %1, %c0_i32_0 : i32
    scf.if %2 {
      %cst_6 = arith.constant 0.000000e+00 : f32
      %10 = vector.broadcast %cst_6 : f32 to vector<8x512xf32>
      %c0_7 = arith.constant 0 : index
      %c0_8 = arith.constant 0 : index
      %11 = vector.load %arg3[%c0_7, %c0_8] : memref<8x512xf32, #tpu.memory_space<vmem>>, vector<8x512xf32>
      tpu.vector_store %arg3[%c0_7, %c0_8], %10 {strides = array<i32>} : memref<8x512xf32, #tpu.memory_space<vmem>>, vector<8x512xf32>,
    } else {
    }
    %c0 = arith.constant 0 : index
    %c0_1 = arith.constant 0 : index
    %3 = vector.load %arg2[%c0, %c0_1] : memref<8x512xf32, #tpu.memory_space<vmem>>, vector<8x512xf32>
    %4 = arith.mulf %3, %3 : vector<8x512xf32>
    %c0_2 = arith.constant 0 : index
    %c0_3 = arith.constant 0 : index
    %5 = vector.load %arg3[%c0_2, %c0_3] : memref<8x512xf32, #tpu.memory_space<vmem>>, vector<8x512xf32>
    %6 = vector.shape_cast %4 : vector<8x512xf32> to vector<1x8x512xf32>
    %cst = arith.constant dense<0.000000e+00> : vector<8x512xf32>
    %7 = vector.multi_reduction <add>, %6, %cst [0] : vector<1x8x512xf32> to vector<8x512xf32>
    %8 = arith.addf %5, %7 : vector<8x512xf32>
    %c0_4 = arith.constant 0 : index
    %c0_5 = arith.constant 0 : index
    %9 = vector.load %arg3[%c0_4, %c0_5] : memref<8x512xf32, #tpu.memory_space<vmem>>, vector<8x512xf32>
    tpu.vector_store %arg3[%c0_4, %c0_5], %8 {strides = array<i32>} : memref<8x512xf32, #tpu.memory_space<vmem>>, vector<8x512xf32>,
    return
  }
  func.func @transform_0(%arg0: i32, %arg1: i32) -> (i32, i32) {
    %c1_i32 = arith.constant 1 : i32
    %0 = arith.muli %arg0, %c1_i32 : i32
    %1 = arith.addi %0, %arg1 : i32
    %c0_i32 = arith.constant 0 : i32
    %2 = arith.minsi %1, %c0_i32 : i32
    %c0_i32_0 = arith.constant 0 : i32
    %c0_i32_1 = arith.constant 0 : i32
    return %2, %c0_i32_0 : i32, i32
  }
  func.func @transform_1(%arg0: i32, %arg1: i32) -> (i32, i32) {
    %c0_i32 = arith.constant 0 : i32
    %c0_i32_0 = arith.constant 0 : i32
    return %arg0, %c0_i32 : i32, i32
  }
}

</mosaic_0001>

<llo_original>
// kernel: tpu_custom_call.1
$region0: #{tpu_custom_call.1}
  #allocation0 [shape = 'u32[]', space=smem, size = 0x4, offset = 0x4, fixed_abs, tag = 'smem constant byte address 0x4 - core index']
  #allocation1 [shape = 'u32[144,128]{1,0:T(1,128)}', space=vmem, size = 0x12000, scoped, tag = 'internal scratch']
  %s0 = inlined_call_operand.hbm [shape: f32[8,512], index: 0, kind: input, shape index: {}]
  %s1 = inlined_call_operand.hbm [shape: f32[8,512], index: 1, kind: output, shape index: {}]
  %s2 = sld [smem:[#allocation0]]
  $region22: #{tpu_custom_call.1} parent=0
    _
  %s4 = ssub.s32 1, %s2
  %s5 = scalar_select 0, %s4, %s2
  $region1: #{tpu_custom_call.1} parent=0
    #allocation2 [shape = 'u8[16384]{0}', space=vmem, size = 0x4000, scoped, tag = 'input window, operand 0, single buffered']
    #allocation3 [shape = 's32[1]{0}', space=sflag, size = 0x4, scoped, tag = 'scoped memory for tpu_custom_call.1']
    #allocation4 [shape = 's32[1]{0}', space=sflag, size = 0x4, scoped, tag = 'scoped memory for tpu_custom_call.1']
    #allocation5 [shape = 'u8[16384]{0}', space=vmem, size = 0x4000, scoped, tag = 'output window, operand 0, single buffered']
    %6 = vsyncpa [#allocation3], 0
    %7 = vsyncpa [#allocation4], 0
    // Predicated region
    $region2: #{tpu_custom_call.1} parent=1 // pred_check
      _
    $region3: #{tpu_custom_call.1} parent=1 // pred_check_branch
      %9 = sbr.rel (0) target = $region5
    $region4: #{tpu_custom_call.1} parent=1 // pred_region
      %s10 = sadd.s32 0, 0
      %p11 = scmp.lt.s32.totalorder %s10, 0
      %s12 = scalar_select %p11, %s10, 0
      %s14 = ssub.s32 512, 512
      %15 = vsyncadd [#allocation3], %s14
      %s16 = smul.addr %s12, 4
      %s17 = smul.addr %s16, 128
      %s18 = scalar_lea.hbm %s0, %s17
      %s20 = sshll.u32 [#allocation2], 4
      %s21 = int_to_ptr.vmem [resolvable:$true] %s20
      %23 = dma.hbm_to_vmem [thread:$0]  %s18, 512, %s21, [#allocation3]
    $region5: #{tpu_custom_call.1} parent=1 // pred_fallthru
      _
    // Predicated region
    $region6: #{tpu_custom_call.1} parent=1 // pred_check
      _
    $region7: #{tpu_custom_call.1} parent=1 // pred_check_branch
      %25 = sbr.rel (0) target = $region9
    $region8: #{tpu_custom_call.1} parent=1 // pred_region
      %26 = dma.done [#allocation3], 512
    $region9: #{tpu_custom_call.1} parent=1 // pred_fallthru
      _
    %s27 = sadd.s32 0, 0
    %p28 = scmp.lt.s32.totalorder %s27, 0
    %s29 = scalar_select %p28, %s27, 0
    %p30 = scmp.eq.s32.totalorder 0, 0
    // Predicated region
    $region10: #{tpu_custom_call.1} parent=1 // pred_check
      %p31 = pneg %p30
    $region11: #{tpu_custom_call.1} parent=1 // pred_check_branch
      %33 = sbr.rel (%p31) target = $region13
    $region12: #{tpu_custom_call.1} parent=1 // pred_region
      %34 = vst [vmem:[#allocation5] sm:$0xff] 0.0
      %35 = vst [vmem:[#allocation5 + $0x8] sm:$0xff] 0.0
      %36 = vst [vmem:[#allocation5 + $0x10] sm:$0xff] 0.0
      %37 = vst [vmem:[#allocation5 + $0x18] sm:$0xff] 0.0
    $region13: #{tpu_custom_call.1} parent=1 // pred_fallthru
      _
    %v38 = vld [vmem:[#allocation2] sm:$0xff]
    %v39 = vld [vmem:[#allocation2 + $0x8] sm:$0xff]
    %v40 = vld [vmem:[#allocation2 + $0x10] sm:$0xff]
    %v41 = vld [vmem:[#allocation2 + $0x18] sm:$0xff]
    %v42 = vmul.f32 %v38, %v38
    %v43 = vmul.f32 %v39, %v39
    %v44 = vmul.f32 %v40, %v40
    %v45 = vmul.f32 %v41, %v41
    %v46 = vld [vmem:[#allocation5] sm:$0xff]
    %v47 = vld [vmem:[#allocation5 + $0x8] sm:$0xff]
    %v48 = vld [vmem:[#allocation5 + $0x10] sm:$0xff]
    %v49 = vld [vmem:[#allocation5 + $0x18] sm:$0xff]
    %v50 = vadd.f32 %v42, 0.0
    %v51 = vadd.f32 %v43, 0.0
    %v52 = vadd.f32 %v44, 0.0
    %v53 = vadd.f32 %v45, 0.0
    %v54 = vadd.f32 %v46, %v50
    %v55 = vadd.f32 %v47, %v51
    %v56 = vadd.f32 %v48, %v52
    %v57 = vadd.f32 %v49, %v53
    %58 = vst [vmem:[#allocation5] sm:$0xff] %v54
    %59 = vst [vmem:[#allocation5 + $0x8] sm:$0xff] %v55
    %60 = vst [vmem:[#allocation5 + $0x10] sm:$0xff] %v56
    %61 = vst [vmem:[#allocation5 + $0x18] sm:$0xff] %v57
    // Predicated region
    $region14: #{tpu_custom_call.1} parent=1 // pred_check
      _
    $region15: #{tpu_custom_call.1} parent=1 // pred_check_branch
      %63 = sbr.rel (0) target = $region17
    $region16: #{tpu_custom_call.1} parent=1 // pred_region
      %s65 = ssub.s32 512, 512
      %66 = vsyncadd [#allocation4], %s65
      %s68 = sshll.u32 [#allocation5], 4
      %s69 = int_to_ptr.vmem [resolvable:$true] %s68
      %71 = dma.vmem_to_hbm [thread:$0]  %s69, 512, %s1, [#allocation4]
    $region17: #{tpu_custom_call.1} parent=1 // pred_fallthru
      _
    // Predicated region
    $region18: #{tpu_custom_call.1} parent=1 // pred_check
      _
    $region19: #{tpu_custom_call.1} parent=1 // pred_check_branch
      %73 = sbr.rel (0) target = $region21
    $region20: #{tpu_custom_call.1} parent=1 // pred_region
      %74 = dma.done [#allocation4], 512
    $region21: #{tpu_custom_call.1} parent=1 // pred_fallthru
      _
    %75 = vsyncpa [#allocation3], 1
    %76 = vsyncpa [#allocation4], 1

</llo_original>
